<compile_context>
chip_gen: v6e
topology: v6e:2x2x1
jax: 0.10.0
libtpu: 0.0.40
codegen_flags: <defaults>
</compile_context>

<pallas_src>
import functools

import jax
import jax.numpy as jnp
from jax.experimental import pallas as pl
from jax.experimental.pallas import tpu as pltpu


def _round_up(x, m):
    return (x + m - 1) // m * m


def _stats_kernel(x_ref, w1_ref, b1_ref, sum_ref, sumsq_ref, *, batch_size, tile_b):
    """Pass 1: accumulate per-feature sum / sum-of-squares of h = x @ W1 + b1
    across batch tiles (full-batch BatchNorm1d training statistics)."""
    i = pl.program_id(0)

    # bf16 operands, f32 accumulation on the MXU.
    h = jnp.dot(x_ref[...], w1_ref[...], preferred_element_type=jnp.float32)
    h = h + b1_ref[...]

    # Mask padded batch rows so they do not pollute the statistics.
    row = i * tile_b + jax.lax.broadcasted_iota(jnp.int32, h.shape, 0)
    h = jnp.where(row < batch_size, h, 0.0)

    @pl.when(i == 0)
    def _():
        sum_ref[...] = jnp.zeros_like(sum_ref)
        sumsq_ref[...] = jnp.zeros_like(sumsq_ref)

    sum_ref[...] += jnp.sum(h, axis=0, keepdims=True)
    sumsq_ref[...] += jnp.sum(h * h, axis=0, keepdims=True)


def _apply_kernel(x_ref, w1_ref, b1_ref, sum_ref, sumsq_ref, gamma_ref, beta_ref,
                  w2_ref, b2_ref, o_ref, *, batch_size):
    """Pass 2: recompute h, normalize with full-batch stats, ReLU, second matmul."""
    h = jnp.dot(x_ref[...], w1_ref[...], preferred_element_type=jnp.float32)
    h = h + b1_ref[...]

    inv_b = 1.0 / batch_size
    mean = sum_ref[...] * inv_b
    var = sumsq_ref[...] * inv_b - mean * mean            # single-pass biased variance
    inv_std = jax.lax.rsqrt(var + 1e-5)                   # eps matches nn.BatchNorm1d
    scale = gamma_ref[...] * inv_std
    shift = beta_ref[...] - mean * scale

    h_bn = h * scale + shift                              # BN in f32
    h_relu = jnp.maximum(h_bn, 0.0).astype(jnp.bfloat16)  # bf16 operand for 2nd MXU pass

    o_ref[...] = (jnp.dot(h_relu, w2_ref[...], preferred_element_type=jnp.float32)
                  + b2_ref[...])


def mlp_forward(x, w1, b1, gamma, beta, w2, b2, *, tile_b=128):
    """x:[B,Din] f32, w1:[Din,H], b1/gamma/beta:[1,H], w2:[H,Dout], b2:[1,Dout]."""
    B, d_in = x.shape
    hidden = w1.shape[1]
    d_out = w2.shape[1]

    f32, bf16 = jnp.float32, jnp.bfloat16

    # Lane-dense padding: feature dims -> multiples of 128; batch -> multiple of tile.
    d_in_p = _round_up(d_in, 128)
    hid_p = _round_up(hidden, 128)
    d_out_p = _round_up(d_out, 128)
    tile_b = max(8, min(_round_up(tile_b, 8), _round_up(B, 8)))
    b_p = _round_up(B, tile_b)
    nb = b_p // tile_b

    x_p = jnp.zeros((b_p, d_in_p), bf16).at[:B, :d_in].set(x.astype(bf16))
    w1_p = jnp.zeros((d_in_p, hid_p), bf16).at[:d_in, :hidden].set(w1.astype(bf16))
    b1_p = jnp.zeros((1, hid_p), f32).at[:, :hidden].set(b1.reshape(1, hidden).astype(f32))
    g_p = jnp.zeros((1, hid_p), f32).at[:, :hidden].set(gamma.reshape(1, hidden).astype(f32))
    be_p = jnp.zeros((1, hid_p), f32).at[:, :hidden].set(beta.reshape(1, hidden).astype(f32))
    w2_p = jnp.zeros((hid_p, d_out_p), bf16).at[:hidden, :d_out].set(w2.astype(bf16))
    b2_p = jnp.zeros((1, d_out_p), f32).at[:, :d_out].set(b2.reshape(1, d_out).astype(f32))

    def resident(shape):  # VMEM-resident across the whole grid
        return pl.BlockSpec(shape, lambda i: (0, 0))

    x_spec = pl.BlockSpec((tile_b, d_in_p), lambda i: (i, 0))

    # ---- Pass 1: full-batch BN statistics (reduction over batch tiles) ----
    stats_cost = pl.CostEstimate(
        flops=2 * b_p * d_in_p * hid_p + 4 * b_p * hid_p,
        transcendentals=0,
        bytes_accessed=x_p.size * 2 + w1_p.size * 2 + b1_p.size * 4 + 2 * hid_p * 4,
    )
    h_sum, h_sumsq = pl.pallas_call(
        functools.partial(_stats_kernel, batch_size=B, tile_b=tile_b),
        grid=(nb,),
        in_specs=[x_spec, resident((d_in_p, hid_p)), resident((1, hid_p))],
        out_specs=[resident((1, hid_p)), resident((1, hid_p))],
        out_shape=[jax.ShapeDtypeStruct((1, hid_p), f32),
                   jax.ShapeDtypeStruct((1, hid_p), f32)],
        compiler_params=pltpu.CompilerParams(dimension_semantics=("arbitrary",)),
        cost_estimate=stats_cost,
    )(x_p, w1_p, b1_p)

    # ---- Pass 2: normalize + ReLU + second matmul (independent batch tiles) ----
    apply_cost = pl.CostEstimate(
        flops=2 * b_p * d_in_p * hid_p + 2 * b_p * hid_p * d_out_p + 6 * b_p * hid_p,
        transcendentals=nb * hid_p,
        bytes_accessed=(x_p.size * 2 + w1_p.size * 2 + w2_p.size * 2
                        + (b1_p.size + g_p.size + be_p.size + b2_p.size + 2 * hid_p) * 4
                        + b_p * d_out_p * 4),
    )
    out_p = pl.pallas_call(
        functools.partial(_apply_kernel, batch_size=B),
        grid=(nb,),
        in_specs=[x_spec,
                  resident((d_in_p, hid_p)), resident((1, hid_p)),
                  resident((1, hid_p)), resident((1, hid_p)),
                  resident((1, hid_p)), resident((1, hid_p)),
                  resident((hid_p, d_out_p)), resident((1, d_out_p))],
        out_specs=pl.BlockSpec((tile_b, d_out_p), lambda i: (i, 0)),
        out_shape=jax.ShapeDtypeStruct((b_p, d_out_p), f32),
        compiler_params=pltpu.CompilerParams(dimension_semantics=("parallel",)),
        cost_estimate=apply_cost,
    )(x_p, w1_p, b1_p, h_sum, h_sumsq, g_p, be_p, w2_p, b2_p)

    return out_p[:B, :d_out]


def init_params(key, input_dim, hidden_dim, output_dim):
    k1, k2, k3, k4 = jax.random.split(key, 4)
    # PyTorch Linear default init: U(-1/sqrt(fan_in), 1/sqrt(fan_in))
    lim1 = 1.0 / (input_dim ** 0.5)
    lim2 = 1.0 / (hidden_dim ** 0.5)
    w1 = jax.random.uniform(k1, (input_dim, hidden_dim), jnp.float32, -lim1, lim1)
    b1 = jax.random.uniform(k2, (1, hidden_dim), jnp.float32, -lim1, lim1)
    w2 = jax.random.uniform(k3, (hidden_dim, output_dim), jnp.float32, -lim2, lim2)
    b2 = jax.random.uniform(k4, (1, output_dim), jnp.float32, -lim2, lim2)
    gamma = jnp.ones((1, hidden_dim), jnp.float32)
    beta = jnp.zeros((1, hidden_dim), jnp.float32)
    return w1, b1, gamma, beta, w2, b2


def mlp_reference(x, w1, b1, gamma, beta, w2, b2):
    # Mirrors the kernel's bf16-operand / f32-accumulation semantics.
    xb, w1b, w2b = x.astype(jnp.bfloat16), w1.astype(jnp.bfloat16), w2.astype(jnp.bfloat16)
    h = jnp.dot(xb, w1b, preferred_element_type=jnp.float32) + b1
    mean = jnp.mean(h, axis=0, keepdims=True)
    var = jnp.mean(h * h, axis=0, keepdims=True) - mean * mean
    h = (h - mean) * jax.lax.rsqrt(var + 1e-5) * gamma + beta
    h = jnp.maximum(h, 0.0).astype(jnp.bfloat16)
    return jnp.dot(h, w2b, preferred_element_type=jnp.float32) + b2


if __name__ == "__main__":
    # Small shapes; B=20 with tile_b=8 exercises multiple grid steps + batch-pad masking.
    B, input_dim, hidden_dim, output_dim = 20, 32, 64, 32

    key = jax.random.PRNGKey(0)
    kx, kp = jax.random.split(key)
    x = jax.random.normal(kx, (B, input_dim), jnp.float32)
    params = init_params(kp, input_dim, hidden_dim, output_dim)

    out = mlp_forward(x, *params, tile_b=8)
    out = jax.block_until_ready(out)

    ref = mlp_reference(x, *params)
    assert out.shape == (B, output_dim)
    assert jnp.allclose(out, ref, atol=2e-3, rtol=2e-3), "Pallas output mismatch vs reference"

    print("KERNEL_OK")
</pallas_src>

<mosaic_0001>
module attributes {stable_mosaic.version = 11 : i64} {
  func.func @_stats_kernel(%arg0: i32, %arg1: memref<8x128xbf16, #tpu.memory_space<vmem>>, %arg2: memref<128x128xbf16, #tpu.memory_space<vmem>>, %arg3: memref<1x128xf32, #tpu.memory_space<vmem>>, %arg4: memref<1x128xf32, #tpu.memory_space<vmem>>, %arg5: memref<1x128xf32, #tpu.memory_space<vmem>>) attributes {dimension_semantics = [#tpu.dimension_semantics<arbitrary>], iteration_bounds = array<i64: 3>, scalar_prefetch = 0 : i64, scratch_operands = 0 : i64, tpu.core_type = #tpu.core_type<tc>, window_params = [{transform_indices = @transform_0, window_bounds = array<i64: 8, 128>}, {pipeline_mode = #tpu.pipeline_mode<synchronous>, transform_indices = @transform_1, window_bounds = array<i64: 128, 128>}, {pipeline_mode = #tpu.pipeline_mode<synchronous>, transform_indices = @transform_2, window_bounds = array<i64: 1, 128>}, {pipeline_mode = #tpu.pipeline_mode<synchronous>, transform_indices = @transform_3, window_bounds = array<i64: 1, 128>}, {pipeline_mode = #tpu.pipeline_mode<synchronous>, transform_indices = @transform_4, window_bounds = array<i64: 1, 128>}]} {
    %c0 = arith.constant 0 : index
    %c0_0 = arith.constant 0 : index
    %0 = vector.load %arg1[%c0, %c0_0] : memref<8x128xbf16, #tpu.memory_space<vmem>>, vector<8x128xbf16>
    %c0_1 = arith.constant 0 : index
    %c0_2 = arith.constant 0 : index
    %1 = vector.load %arg2[%c0_1, %c0_2] : memref<128x128xbf16, #tpu.memory_space<vmem>>, vector<128x128xbf16>
    %cst = arith.constant dense<0.000000e+00> : vector<8x128xf32>
    %2 = tpu.matmul %0, %1, %cst {dimension_numbers = #tpu.dot_dimension_numbers<[1], [0], [0], [1], [0, 0, 1, 1], [], []>} : vector<8x128xbf16>, vector<128x128xbf16>, vector<8x128xf32> -> vector<8x128xf32>
    %c0_3 = arith.constant 0 : index
    %c0_4 = arith.constant 0 : index
    %3 = vector.load %arg3[%c0_3, %c0_4] : memref<1x128xf32, #tpu.memory_space<vmem>>, vector<1x128xf32>
    %4 = vector.broadcast %3 : vector<1x128xf32> to vector<8x128xf32>
    %5 = arith.addf %2, %4 : vector<8x128xf32>
    %c8_i32 = arith.constant 8 : i32
    %6 = arith.muli %arg0, %c8_i32 : i32
    %7 = tpu.iota {dimensions = array<i32: 0>} : vector<8x128xi32>
    %8 = vector.broadcast %6 : i32 to vector<8x128xi32>
    %9 = arith.addi %8, %7 : vector<8x128xi32>
    %c20_i32 = arith.constant 20 : i32
    %10 = vector.broadcast %c20_i32 : i32 to vector<8x128xi32>
    %11 = arith.cmpi slt, %9, %10 : vector<8x128xi32>
    %cst_5 = arith.constant 0.000000e+00 : f32
    %12 = vector.broadcast %cst_5 : f32 to vector<8x128xf32>
    %13 = arith.select %11, %5, %12 : vector<8x128xi1>, vector<8x128xf32>
    %c0_i32 = arith.constant 0 : i32
    %14 = arith.cmpi eq, %arg0, %c0_i32 : i32
    %15 = arith.extui %14 : i1 to i32
    %c0_i32_6 = arith.constant 0 : i32
    %16 = arith.cmpi ne, %15, %c0_i32_6 : i32
    scf.if %16 {
      %cst_17 = arith.constant 0.000000e+00 : f32
      %28 = vector.broadcast %cst_17 : f32 to vector<1x128xf32>
      %c0_18 = arith.constant 0 : index
      %c0_19 = arith.constant 0 : index
      %29 = vector.load %arg4[%c0_18, %c0_19] : memref<1x128xf32, #tpu.memory_space<vmem>>, vector<1x128xf32>
      tpu.vector_store %arg4[%c0_18, %c0_19], %28 {strides = array<i32>} : memref<1x128xf32, #tpu.memory_space<vmem>>, vector<1x128xf32>,
      %cst_20 = arith.constant 0.000000e+00 : f32
      %30 = vector.broadcast %cst_20 : f32 to vector<1x128xf32>
      %c0_21 = arith.constant 0 : index
      %c0_22 = arith.constant 0 : index
      %31 = vector.load %arg5[%c0_21, %c0_22] : memref<1x128xf32, #tpu.memory_space<vmem>>, vector<1x128xf32>
      tpu.vector_store %arg5[%c0_21, %c0_22], %30 {strides = array<i32>} : memref<1x128xf32, #tpu.memory_space<vmem>>, vector<1x128xf32>,
    } else {
    }
    %c0_7 = arith.constant 0 : index
    %c0_8 = arith.constant 0 : index
    %17 = vector.load %arg4[%c0_7, %c0_8] : memref<1x128xf32, #tpu.memory_space<vmem>>, vector<1x128xf32>
    %cst_9 = arith.constant dense<0.000000e+00> : vector<128xf32>
    %18 = vector.multi_reduction <add>, %13, %cst_9 [0] : vector<8x128xf32> to vector<128xf32>
    %19 = vector.shape_cast %18 : vector<128xf32> to vector<1x128xf32>
    %20 = arith.addf %17, %19 : vector<1x128xf32>
    %c0_10 = arith.constant 0 : index
    %c0_11 = arith.constant 0 : index
    %21 = vector.load %arg4[%c0_10, %c0_11] : memref<1x128xf32, #tpu.memory_space<vmem>>, vector<1x128xf32>
    tpu.vector_store %arg4[%c0_10, %c0_11], %20 {strides = array<i32>} : memref<1x128xf32, #tpu.memory_space<vmem>>, vector<1x128xf32>,
    %c0_12 = arith.constant 0 : index
    %c0_13 = arith.constant 0 : index
    %22 = vector.load %arg5[%c0_12, %c0_13] : memref<1x128xf32, #tpu.memory_space<vmem>>, vector<1x128xf32>
    %23 = arith.mulf %13, %13 : vector<8x128xf32>
    %cst_14 = arith.constant dense<0.000000e+00> : vector<128xf32>
    %24 = vector.multi_reduction <add>, %23, %cst_14 [0] : vector<8x128xf32> to vector<128xf32>
    %25 = vector.shape_cast %24 : vector<128xf32> to vector<1x128xf32>
    %26 = arith.addf %22, %25 : vector<1x128xf32>
    %c0_15 = arith.constant 0 : index
    %c0_16 = arith.constant 0 : index
    %27 = vector.load %arg5[%c0_15, %c0_16] : memref<1x128xf32, #tpu.memory_space<vmem>>, vector<1x128xf32>
    tpu.vector_store %arg5[%c0_15, %c0_16], %26 {strides = array<i32>} : memref<1x128xf32, #tpu.memory_space<vmem>>, vector<1x128xf32>,
    return
  }
  func.func @transform_0(%arg0: i32) -> (i32, i32) {
    %c0_i32 = arith.constant 0 : i32
    %c0_i32_0 = arith.constant 0 : i32
    return %arg0, %c0_i32 : i32, i32
  }
  func.func @transform_1(%arg0: i32) -> (i32, i32) {
    %c0_i32 = arith.constant 0 : i32
    %c0_i32_0 = arith.constant 0 : i32
    %c0_i32_1 = arith.constant 0 : i32
    return %c0_i32, %c0_i32_0 : i32, i32
  }
  func.func @transform_2(%arg0: i32) -> (i32, i32) {
    %c0_i32 = arith.constant 0 : i32
    %c0_i32_0 = arith.constant 0 : i32
    %c0_i32_1 = arith.constant 0 : i32
    return %c0_i32, %c0_i32_0 : i32, i32
  }
  func.func @transform_3(%arg0: i32) -> (i32, i32) {
    %c0_i32 = arith.constant 0 : i32
    %c0_i32_0 = arith.constant 0 : i32
    %c0_i32_1 = arith.constant 0 : i32
    return %c0_i32, %c0_i32_0 : i32, i32
  }
  func.func @transform_4(%arg0: i32) -> (i32, i32) {
    %c0_i32 = arith.constant 0 : i32
    %c0_i32_0 = arith.constant 0 : i32
    %c0_i32_1 = arith.constant 0 : i32
    return %c0_i32, %c0_i32_0 : i32, i32
  }
}

</mosaic_0001>

<llo_original>
// kernel: tpu_custom_call.1
$region0: #{tpu_custom_call.1}
  #allocation0 [shape = 'u32[]', space=smem, size = 0x4, offset = 0x4, fixed_abs, tag = 'smem constant byte address 0x4 - core index']
  #allocation1 [shape = 'u32[144,128]{1,0:T(1,128)}', space=vmem, size = 0x12000, scoped, tag = 'internal scratch']
  %s0 = inlined_call_operand.hbm [shape: bf16[24,128], index: 0, kind: input, shape index: {}]
  %s1 = inlined_call_operand.hbm [shape: bf16[128,128], index: 1, kind: input, shape index: {}]
  %s2 = inlined_call_operand.vmem [shape: f32[1,128], index: 2, kind: input, shape index: {}]
  %s3 = inlined_call_operand.hbm [shape: f32[1,128], index: 3, kind: output, shape index: {0}]
  %s4 = inlined_call_operand.hbm [shape: f32[1,128], index: 4, kind: output, shape index: {1}]
  %5 = xla_tuple %s3, %s4
  %s6 = sld [smem:[#allocation0]]
  $region65: #{tpu_custom_call.1} parent=0
    _
  %s8 = ssub.s32 1, %s6
  %s9 = scalar_select 0, %s8, %s6
  $region1: #{tpu_custom_call.1} parent=0
    #allocation2 [shape = 'u8[4096]{0}', space=vmem, size = 0x1000, scoped, tag = 'input window, operand 0']
    #allocation3 [shape = 's32[2]{0}', space=sflag, size = 0x8, scoped, tag = 'scoped memory for tpu_custom_call.1']
    #allocation4 [shape = 's32[2]{0}', space=sflag, size = 0x8, scoped, tag = 'scoped memory for tpu_custom_call.1']
    #allocation5 [shape = 'u8[32768]{0}', space=vmem, size = 0x8000, scoped, tag = 'input window, operand 1, single buffered']
    #allocation6 [shape = 's32[1]{0}', space=sflag, size = 0x4, scoped, tag = 'scoped memory for tpu_custom_call.1']
    #allocation7 [shape = 'u8[512]{0}', space=vmem, size = 0x400, scoped, tag = 'output window, operand 0, single buffered']
    #allocation8 [shape = 'u8[512]{0}', space=vmem, size = 0x400, scoped, tag = 'output window, operand 1, single buffered']
    #allocation9 [shape = 's32[1]{0}', space=sflag, size = 0x4, scoped, tag = 'scoped memory for tpu_custom_call.1']
    %10 = vsyncpa [#allocation3], 0
    %s11 = scalar_lea.sflag [#allocation3], 1
    %12 = vsyncpa %s11, 0
    %13 = vsyncpa [#allocation6], 0
    %14 = vsyncpa [#allocation4], 0
    %15 = vsyncpa [#allocation9], 0
    loop: start=0, step=1, limit=5
    $region2: #{tpu_custom_call.1} parent=1 // loop_pre_header
      _
    $region3: #{tpu_custom_call.1} parent=1 // loop_header
      %s17 = sphi 0, %s21
      %p18 = scmp.ge.s32.totalorder %s17, 5
      %s27 = sphi 0, %s29
      %s30 = sphi 0, %s27
      %s31 = sphi 0, %s30
      %s47 = sphi 0, %s31
      %s51 = sphi 0, %s51
      %s53 = sphi 0, %s51
      %s54 = sphi 0, %s53
      %s68 = sphi 0, %s54
      %s72 = sphi 0, %s72
      %s74 = sphi 0, %s72
      %s75 = sphi 0, %s74
      %s89 = sphi 0, %s75
      %s93 = sphi 0, %s93
      %s95 = sphi 0, %s93
      %s96 = sphi 0, %s95
      %s110 = sphi 0, %s96
      %s114 = sphi 0, %s114
      %s116 = sphi 0, %s114
      %s117 = sphi 0, %s116
      %s131 = sphi 0, %s117
    $region4: #{tpu_custom_call.1} parent=1 // loop_header_branch
      %20 = sbr.rel (%p18) target = $region8
    $region5: #{tpu_custom_call.1} parent=1 // loop_body
      %s22 = ssub.s32 %s17, 1
      %s23 = ssub.s32 %s17, 2
      %s24 = sadd.s32 %s17, 1
      %s25 = ssub.s32 %s17, %s24
      %p26 = scmp.eq.s32.totalorder %s25, 0
      %s28 = sadd.s32 %s27, 1
      %s29 = scalar_select %p26, %s27, %s28
      %p32 = pneg %p26
      %p33 = scmp.eq.s32.totalorder %s17, 2
      %p34 = por %p32, %p33
      %p35 = scmp.ne.s32.totalorder %s27, %s30
      %p36 = scmp.eq.s32.totalorder %s17, 0
      %p37 = por %p35, %p36
      %p38 = scmp.ne.s32.totalorder %s27, %s30
      %p39 = scmp.eq.s32.totalorder %s22, 2
      %p40 = por %p38, %p39
      %p41 = scmp.ne.s32.totalorder %s30, %s31
      %p42 = scmp.eq.s32.totalorder %s22, 0
      %p43 = por %p41, %p42
      %p44 = scmp.ne.s32.totalorder %s30, %s31
      %p45 = scmp.eq.s32.totalorder %s23, 2
      %p46 = por %p44, %p45
      %p48 = scmp.ne.s32.totalorder %s31, %s47
      %p49 = scmp.eq.s32.totalorder %s23, 0
      %p50 = por %p48, %p49
      %s52 = sadd.s32 %s51, 1
      %p55 = scmp.eq.s32.totalorder %s17, 2
      %p56 = scmp.ne.s32.totalorder %s51, %s53
      %p57 = scmp.eq.s32.totalorder %s17, 0
      %p58 = por %p56, %p57
      %p59 = scmp.ne.s32.totalorder %s51, %s53
      %p60 = scmp.eq.s32.totalorder %s22, 2
      %p61 = por %p59, %p60
      %p62 = scmp.ne.s32.totalorder %s53, %s54
      %p63 = scmp.eq.s32.totalorder %s22, 0
      %p64 = por %p62, %p63
      %p65 = scmp.ne.s32.totalorder %s53, %s54
      %p66 = scmp.eq.s32.totalorder %s23, 2
      %p67 = por %p65, %p66
      %p69 = scmp.ne.s32.totalorder %s54, %s68
      %p70 = scmp.eq.s32.totalorder %s23, 0
      %p71 = por %p69, %p70
      %s73 = sadd.s32 %s72, 1
      %p76 = scmp.eq.s32.totalorder %s17, 2
      %p77 = scmp.ne.s32.totalorder %s72, %s74
      %p78 = scmp.eq.s32.totalorder %s17, 0
      %p79 = por %p77, %p78
      %p80 = scmp.ne.s32.totalorder %s72, %s74
      %p81 = scmp.eq.s32.totalorder %s22, 2
      %p82 = por %p80, %p81
      %p83 = scmp.ne.s32.totalorder %s74, %s75
      %p84 = scmp.eq.s32.totalorder %s22, 0
      %p85 = por %p83, %p84
      %p86 = scmp.ne.s32.totalorder %s74, %s75
      %p87 = scmp.eq.s32.totalorder %s23, 2
      %p88 = por %p86, %p87
      %p90 = scmp.ne.s32.totalorder %s75, %s89
      %p91 = scmp.eq.s32.totalorder %s23, 0
      %p92 = por %p90, %p91
      %s94 = sadd.s32 %s93, 1
      %p97 = scmp.eq.s32.totalorder %s17, 2
      %p98 = scmp.ne.s32.totalorder %s93, %s95
      %p99 = scmp.eq.s32.totalorder %s17, 0
      %p100 = por %p98, %p99
      %p101 = scmp.ne.s32.totalorder %s93, %s95
      %p102 = scmp.eq.s32.totalorder %s22, 2
      %p103 = por %p101, %p102
      %p104 = scmp.ne.s32.totalorder %s95, %s96
      %p105 = scmp.eq.s32.totalorder %s22, 0
      %p106 = por %p104, %p105
      %p107 = scmp.ne.s32.totalorder %s95, %s96
      %p108 = scmp.eq.s32.totalorder %s23, 2
      %p109 = por %p107, %p108
      %p111 = scmp.ne.s32.totalorder %s96, %s110
      %p112 = scmp.eq.s32.totalorder %s23, 0
      %p113 = por %p111, %p112
      %s115 = sadd.s32 %s114, 1
      %p118 = scmp.eq.s32.totalorder %s17, 2
      %p119 = scmp.ne.s32.totalorder %s114, %s116
      %p120 = scmp.eq.s32.totalorder %s17, 0
      %p121 = por %p119, %p120
      %p122 = scmp.ne.s32.totalorder %s114, %s116
      %p123 = scmp.eq.s32.totalorder %s22, 2
      %p124 = por %p122, %p123
      %p125 = scmp.ne.s32.totalorder %s116, %s117
      %p126 = scmp.eq.s32.totalorder %s22, 0
      %p127 = por %p125, %p126
      %p128 = scmp.ne.s32.totalorder %s116, %s117
      %p129 = scmp.eq.s32.totalorder %s23, 2
      %p130 = por %p128, %p129
      %p132 = scmp.ne.s32.totalorder %s117, %s131
      %p133 = scmp.eq.s32.totalorder %s23, 0
      %p134 = por %p132, %p133
      %p135 = scmp.le.s32.totalorder 1, %s17
      %p136 = scmp.lt.s32.totalorder %s17, 4
      %p137 = pnand %p135, %p136
      %p138 = pneg %p137
      // Predicated region
      $region9: #{tpu_custom_call.1} parent=5 // pred_check
        _
      $region10: #{tpu_custom_call.1} parent=5 // pred_check_branch
        %140 = sbr.rel (%p137) target = $region12
      $region11: #{tpu_custom_call.1} parent=5 // pred_region
        %s141 = ssub.s32 %s17, 1
        // Predicated region
        $region13: #{tpu_custom_call.1} parent=11 // pred_check
          %p142 = pneg %p64
        $region14: #{tpu_custom_call.1} parent=11 // pred_check_branch
          %144 = sbr.rel (%p142) target = $region16
        $region15: #{tpu_custom_call.1} parent=11 // pred_region
          %s146 = ssub.s32 1024, 1024
          %147 = vsyncadd [#allocation6], %s146
          %s148 = sshll.u32 [#allocation5], 4
          %s149 = int_to_ptr.vmem [resolvable:$true] %s148
          %154 = dma.hbm_to_vmem [thread:$0]  %s1, 1024, %s149, [#allocation6], 64, 64, 4
        $region16: #{tpu_custom_call.1} parent=11 // pred_fallthru
          _
        // Predicated region
        $region17: #{tpu_custom_call.1} parent=11 // pred_check
          %p155 = pneg %p85
        $region18: #{tpu_custom_call.1} parent=11 // pred_check_branch
          %157 = sbr.rel (%p155) target = $region20
        $region19: #{tpu_custom_call.1} parent=11 // pred_region
          _
        $region20: #{tpu_custom_call.1} parent=11 // pred_fallthru
          _
      $region12: #{tpu_custom_call.1} parent=5 // pred_fallthru
        _
      %p158 = scmp.lt.s32.totalorder %s17, 3
      // Predicated region
      $region21: #{tpu_custom_call.1} parent=5 // pred_check
        %p159 = pneg %p158
      $region22: #{tpu_custom_call.1} parent=5 // pred_check_branch
        %161 = sbr.rel (%p159) target = $region24
      $region23: #{tpu_custom_call.1} parent=5 // pred_region
        // Predicated region
        $region25: #{tpu_custom_call.1} parent=23 // pred_check
          %p162 = pneg %p37
        $region26: #{tpu_custom_call.1} parent=23 // pred_check_branch
          %164 = sbr.rel (%p162) target = $region28
        $region27: #{tpu_custom_call.1} parent=23 // pred_region
          %s165 = sand.u32 %s27, 1
          %s166 = scalar_lea.sflag [#allocation3], %s165
          %s167 = sand.u32 %s27, 1
          %s168 = smul.addr %s167, 4
          %s169 = scalar_lea.vmem [#allocation2], %s168
          %s171 = ssub.s32 64, 64
          %172 = vsyncadd %s166, %s171
          %s173 = smul.addr %s17, 64
          %s174 = scalar_lea.hbm %s0, %s173
          %s176 = sshll.u32 %s169, 4
          %s177 = int_to_ptr.vmem [resolvable:$true] %s176
          %179 = dma.hbm_to_vmem [thread:$0]  %s174, 64, %s177, %s166
        $region28: #{tpu_custom_call.1} parent=23 // pred_fallthru
          _
      $region24: #{tpu_custom_call.1} parent=5 // pred_fallthru
        _
      %p180 = scmp.le.s32.totalorder 1, %s17
      %p181 = scmp.lt.s32.totalorder %s17, 4
      %p182 = pnand %p180, %p181
      %p183 = pneg %p182
      // Predicated region
      $region29: #{tpu_custom_call.1} parent=5 // pred_check
        _
      $region30: #{tpu_custom_call.1} parent=5 // pred_check_branch
        %185 = sbr.rel (%p182) target = $region32
      $region31: #{tpu_custom_call.1} parent=5 // pred_region
        %s186 = ssub.s32 %s17, 1
        %s187 = sand.u32 %s30, 1
        %s188 = scalar_lea.sflag [#allocation3], %s187
        %s189 = sand.u32 %s30, 1
        %s190 = smul.addr %s189, 4
        %s191 = scalar_lea.vmem [#allocation2], %s190
        // Predicated region
        $region33: #{tpu_custom_call.1} parent=31 // pred_check
          %p192 = pneg %p43
        $region34: #{tpu_custom_call.1} parent=31 // pred_check_branch
          %194 = sbr.rel (%p192) target = $region36
        $region35: #{tpu_custom_call.1} parent=31 // pred_region
          %195 = dma.done %s188, 64
        $region36: #{tpu_custom_call.1} parent=31 // pred_fallthru
          _
        // Predicated region
        $region37: #{tpu_custom_call.1} parent=31 // pred_check
          %p196 = pneg %p64
        $region38: #{tpu_custom_call.1} parent=31 // pred_check_branch
          %198 = sbr.rel (%p196) target = $region40
        $region39: #{tpu_custom_call.1} parent=31 // pred_region
          %199 = dma.done [#allocation6], 1024
        $region40: #{tpu_custom_call.1} parent=31 // pred_fallthru
          _
        %s200 = sand.u32 %s30, 1
        %s201 = scalar_lea.sflag [#allocation3], %s200
        %s202 = sand.u32 %s30, 1
        %s203 = smul.addr %s202, 4
        %s204 = scalar_lea.vmem [#allocation2], %s203
        %p205 = pneg %p43
        %p206 = pneg %p40
        %p207 = pneg %p64
        %p208 = pneg %p61
        %p209 = pneg %p85
        %p210 = pneg %p82
        %p211 = pneg %p106
        %p212 = pneg %p103
        %p213 = pneg %p127
        %p214 = pneg %p124
        %v216 = vld [vmem:[%s191] sm:$0xf]
        %v217 = vld [vmem:[#allocation5] sm:$0xf]
        %v218 = vld [vmem:[#allocation5 + $0x4] sm:$0xf]
        %v219 = vld [vmem:[#allocation5 + $0x8] sm:$0xf]
        %v220 = vld [vmem:[#allocation5 + $0xc] sm:$0xf]
        %v221 = vld [vmem:[#allocation5 + $0x10] sm:$0xf]
        %v222 = vld [vmem:[#allocation5 + $0x14] sm:$0xf]
        %v223 = vld [vmem:[#allocation5 + $0x18] sm:$0xf]
        %v224 = vld [vmem:[#allocation5 + $0x1c] sm:$0xf]
        %v225 = vld [vmem:[#allocation5 + $0x20] sm:$0xf]
        %v226 = vld [vmem:[#allocation5 + $0x24] sm:$0xf]
        %v227 = vld [vmem:[#allocation5 + $0x28] sm:$0xf]
        %v228 = vld [vmem:[#allocation5 + $0x2c] sm:$0xf]
        %v229 = vld [vmem:[#allocation5 + $0x30] sm:$0xf]
        %v230 = vld [vmem:[#allocation5 + $0x34] sm:$0xf]
        %v231 = vld [vmem:[#allocation5 + $0x38] sm:$0xf]
        %v232 = vld [vmem:[#allocation5 + $0x3c] sm:$0xf]
        %v233 = vld [vmem:[%s2] sm:$0x1]
        %v235 = vlaneseq
        %v236 = vshrl.u32 %v235, 7
        %v237 = vsub.s32 0, %v236
        %v238 = vrot.slane %v233, %v237
        %v256 = vunpack.c.l.b16 %v217
        %v257 = vunpack.c.l.b16 %v218
        %v258 = vunpack.c.l.b16 %v219
        %v259 = vunpack.c.l.b16 %v220
        %v260 = vunpack.c.l.b16 %v221
        %v261 = vunpack.c.l.b16 %v222
        %v262 = vunpack.c.l.b16 %v223
        %v263 = vunpack.c.l.b16 %v224
        %v264 = vunpack.c.l.b16 %v225
        %v265 = vunpack.c.l.b16 %v226
        %v266 = vunpack.c.l.b16 %v227
        %v267 = vunpack.c.l.b16 %v228
        %v268 = vunpack.c.l.b16 %v229
        %v269 = vunpack.c.l.b16 %v230
        %v270 = vunpack.c.l.b16 %v231
        %v271 = vunpack.c.l.b16 %v232
        %v272 = vpack.c.b16 %v257, %v256
        %v273 = vpack.c.b16 %v259, %v258
        %v274 = vpack.c.b16 %v261, %v260
        %v275 = vpack.c.b16 %v263, %v262
        %v276 = vpack.c.b16 %v265, %v264
        %v277 = vpack.c.b16 %v267, %v266
        %v278 = vpack.c.b16 %v269, %v268
        %v279 = vpack.c.b16 %v271, %v270
        %288 = vmatprep.subr.bf16.mxu0 0
        %289 = vmatpush1.bf16.msra.mxu0 %v279
        %290 = vmatprep.subr.bf16.mxu0 0
        %291 = vmatpush1.bf16.msra.mxu0 %v278
        %292 = vmatprep.subr.bf16.mxu0 0
        %293 = vmatpush1.bf16.msra.mxu0 %v277
        %294 = vmatprep.subr.bf16.mxu0 0
        %295 = vmatpush1.bf16.msra.mxu0 %v276
        %296 = vmatprep.subr.bf16.mxu0 0
        %297 = vmatpush1.bf16.msra.mxu0 %v275
        %298 = vmatprep.subr.bf16.mxu0 0
        %299 = vmatpush1.bf16.msra.mxu0 %v274
        %300 = vmatprep.subr.bf16.mxu0 0
        %301 = vmatpush1.bf16.msra.mxu0 %v273
        %302 = vmatprep.subr.bf16.mxu0 0
        %303 = vmatpush1.bf16.msra.mxu0 %v272
        %304 = vmatprep.subr.bf16.mxu0 0
        %305 = vmatpush2.bf16.msra.mxu0 0
        %306 = vmatprep.subr.bf16.mxu0 0
        %307 = vmatpush2.bf16.msra.mxu0 0
        %308 = vmatprep.subr.bf16.mxu0 0
        %309 = vmatpush2.bf16.msra.mxu0 0
        %310 = vmatprep.subr.bf16.mxu0 0
        %311 = vmatpush2.bf16.msra.mxu0 0
        %312 = vmatprep.subr.bf16.mxu0 0
        %313 = vmatpush2.bf16.msra.mxu0 0
        %314 = vmatprep.subr.bf16.mxu0 0
        %315 = vmatpush2.bf16.msra.mxu0 0
        %316 = vmatprep.subr.bf16.mxu0 0
        %317 = vmatpush2.bf16.msra.mxu0 0
        %318 = vmatprep.subr.bf16.mxu0 0
        %319 = vmatpush2.bf16.msra.mxu0 0
        %320 = vmatprep.mubr.bf16.mxu0 0
        %321 = vmatmul.mubr.bf16.gmra.mxu0 %v216
        %v322 = vpop.f32.mrf.mxu0
        %v323 = vadd.f32 %v238, %v322
        %v324 = vpop.f32.mrf.mxu0
        %v325 = vpop.f32.mrf.mxu0
        %v326 = vpop.f32.mrf.mxu0
        %327 = vdwg.mxu0
        %s328 = smul.u32 %s22, 8
        %v329 = vlaneseq
        %v330 = vshrl.u32 %v329, 7
        %v331 = vstv %s328
        %v332 = vadd.s32 %v331, %v330
        %vm333 = vcmp.lt.s32.totalorder %v332, 20
        %v334 = vsel %vm333, %v323, 0.0
        %p335 = scmp.eq.s32.totalorder %s22, 0
        // Predicated region
        $region41: #{tpu_custom_call.1} parent=31 // pred_check
          %p336 = pneg %p335
        $region42: #{tpu_custom_call.1} parent=31 // pred_check_branch
          %338 = sbr.rel (%p336) target = $region44
        $region43: #{tpu_custom_call.1} parent=31 // pred_region
          %339 = vst [vmem:[#allocation7] sm:$0x1] 0.0
          %340 = vst [vmem:[#allocation8] sm:$0x1] 0.0
        $region44: #{tpu_custom_call.1} parent=31 // pred_fallthru
          _
        %v341 = vld [vmem:[#allocation7] sm:$0x1]
        %v342 = vrot.slane %v334, 4
        %v343 = vadd.f32 %v334, %v342
        %v344 = vrot.slane %v343, 2
        %v345 = vadd.f32 %v343, %v344
        %v346 = vrot.slane %v345, 1
        %v347 = vadd.f32 %v345, %v346
        %v348 = vadd.f32 %v341, %v347
        %349 = vst [vmem:[#allocation7] sm:$0x1] %v348
        %v350 = vld [vmem:[#allocation8] sm:$0x1]
        %v351 = vmul.f32 %v334, %v334
        %v352 = vrot.slane %v351, 4
        %v353 = vadd.f32 %v351, %v352
        %v354 = vrot.slane %v353, 2
        %v355 = vadd.f32 %v353, %v354
        %v356 = vrot.slane %v355, 1
        %v357 = vadd.f32 %v355, %v356
        %v358 = vadd.f32 %v350, %v357
        %359 = vst [vmem:[#allocation8] sm:$0x1] %v358
        // Predicated region
        $region45: #{tpu_custom_call.1} parent=31 // pred_check
          %p360 = pneg %p103
        $region46: #{tpu_custom_call.1} parent=31 // pred_check_branch
          %362 = sbr.rel (%p360) target = $region48
        $region47: #{tpu_custom_call.1} parent=31 // pred_region
          %s364 = ssub.s32 16, 16
          %365 = vsyncadd [#allocation4], %s364
          %s367 = sshll.u32 [#allocation7], 4
          %s368 = int_to_ptr.vmem [resolvable:$true] %s367
          %370 = dma.vmem_to_hbm [thread:$0]  %s368, 16, %s3, [#allocation4]
        $region48: #{tpu_custom_call.1} parent=31 // pred_fallthru
          _
        // Predicated region
        $region49: #{tpu_custom_call.1} parent=31 // pred_check
          %p371 = pneg %p124
        $region50: #{tpu_custom_call.1} parent=31 // pred_check_branch
          %373 = sbr.rel (%p371) target = $region52
        $region51: #{tpu_custom_call.1} parent=31 // pred_region
          %s375 = ssub.s32 16, 16
          %376 = vsyncadd [#allocation9], %s375
          %s378 = sshll.u32 [#allocation8], 4
          %s379 = int_to_ptr.vmem [resolvable:$true] %s378
          %381 = dma.vmem_to_hbm [thread:$0]  %s379, 16, %s4, [#allocation9]
        $region52: #{tpu_custom_call.1} parent=31 // pred_fallthru
          _
        // Predicated region
        $region53: #{tpu_custom_call.1} parent=31 // pred_check
          %p382 = pneg %p103
        $region54: #{tpu_custom_call.1} parent=31 // pred_check_branch
          %384 = sbr.rel (%p382) target = $region56
        $region55: #{tpu_custom_call.1} parent=31 // pred_region
          %385 = dma.done [#allocation4], 16
        $region56: #{tpu_custom_call.1} parent=31 // pred_fallthru
          _
        // Predicated region
        $region57: #{tpu_custom_call.1} parent=31 // pred_check
          %p386 = pneg %p124
        $region58: #{tpu_custom_call.1} parent=31 // pred_check_branch
          %388 = sbr.rel (%p386) target = $region60
        $region59: #{tpu_custom_call.1} parent=31 // pred_region
          %389 = dma.done [#allocation9], 16
        $region60: #{tpu_custom_call.1} parent=31 // pred_fallthru
          _
      $region32: #{tpu_custom_call.1} parent=5 // pred_fallthru
        _
      %p390 = scmp.le.s32.totalorder 2, %s17
      // Predicated region
      $region61: #{tpu_custom_call.1} parent=5 // pred_check
        %p391 = pneg %p390
      $region62: #{tpu_custom_call.1} parent=5 // pred_check_branch
        %393 = sbr.rel (%p391) target = $region64
      $region63: #{tpu_custom_call.1} parent=5 // pred_region
        %s394 = ssub.s32 %s17, 2
      $region64: #{tpu_custom_call.1} parent=5 // pred_fallthru
        _
    $region6: #{tpu_custom_call.1} parent=1 // loop_footer
      %s21 = sadd.s32 1, %s17
    $region7: #{tpu_custom_call.1} parent=1 // loop_footer_branch
      %16 = sbr.rel target = $region3
    $region8: #{tpu_custom_call.1} parent=1 // loop_exit
      _
    %395 = vsyncpa [#allocation3], 1
    %s396 = scalar_lea.sflag [#allocation3], 1
    %397 = vsyncpa %s396, 1
    %398 = vsyncpa [#allocation6], 1
    %399 = vsyncpa [#allocation4], 1
    %s400 = scalar_lea.sflag [#allocation4], 1
    %401 = vsyncpa %s400, 1
    %402 = vsyncpa [#allocation9], 1

</llo_original>
